<compile_context>
chip_gen: v5e
topology: v5e:2x2
jax: 0.10.0
libtpu: 0.0.40
codegen_flags: <defaults>
</compile_context>

<pallas_src>
import jax
import jax.numpy as jnp
from jax.experimental import pallas as pl
from jax.experimental.pallas import tpu as pltpu

NUM_FEATURES = 4
LANES = 128
SAMPLES_PER_ROW = LANES // NUM_FEATURES    # 32 samples per 128-lane row


def classifier_kernel(m_ref, s_ref, b_ref, x_ref, o_ref):
    """Processes one (r_tile, 128) tile of the interleaved (rows, 128) layout.

    Lane l of a row holds feature (l % 4) of sample (row * 32 + l // 4), i.e.
    exactly the row-major view of the (B, 4) input -- no transpose anywhere.

    m_ref : (128, 128) f32 VMEM -- block-diag folded weight (32 copies of W^T).
    s_ref : (128, 128) f32 VMEM -- block-diag ones (per-sample sum broadcast).
    b_ref : (1, 128)   f32 VMEM -- folded bias tiled per 4-lane group.
    x_ref, o_ref : (r_tile, 128) f32 VMEM tiles.
    """
    x = x_ref[...]                                           # (r, 128)

    # ---- Folded affine: one block-diagonal matmul on the (idle) MXU. -------
    # (x @ M)[r, 4g+c] = sum_k x[r, 4g+k] * W_fold[c, k]
    z = jnp.dot(x, m_ref[...], preferred_element_type=jnp.float32) + b_ref[...]

    # ---- Per-sample (4-lane group) max via a 2-step lane butterfly (XLU). --
    lane = jax.lax.broadcasted_iota(jnp.int32, z.shape, 1)
    sel1 = (lane % 2) == 0        # even lane: partner is lane+1, else lane-1
    sel2 = (lane % 4) < 2         # low pair of group: partner pair at +2, else -2
    p1 = jnp.where(sel1, pltpu.roll(z, LANES - 1, 1), pltpu.roll(z, 1, 1))
    m1 = jnp.maximum(z, p1)       # pairwise max
    p2 = jnp.where(sel2, pltpu.roll(m1, LANES - 2, 1), pltpu.roll(m1, 2, 1))
    m = jnp.maximum(m1, p2)       # group max, replicated to all 4 lanes
    # (rolls only ever source lanes inside the same 4-lane group, so the
    #  128-lane wrap of pltpu.roll never mixes samples)

    # ---- Numerically stable softmax over each 4-lane group. ----------------
    e = jnp.exp(z - m)                                       # EUP
    # Per-sample sum broadcast back to all 4 lanes: one more (idle-)MXU matmul.
    denom = jnp.dot(e, s_ref[...], preferred_element_type=jnp.float32)
    o_ref[...] = e / denom        # lane-dense, full-tile store


def _round_up(n, m):
    return ((n + m - 1) // m) * m


def classifier_forward(x, w1, b1, w2, b2, max_rows_per_tile=2048):
    """softmax(fc2(fc1(x)), dim=1) with PyTorch-layout params.

    x: (B, 4) f32.  w1, w2: (4, 4) in (out_features, in_features) layout.
    b1, b2: (1, 4) (or (4,)) biases.
    """
    B, F = x.shape
    assert F == NUM_FEATURES
    x = x.astype(jnp.float32)

    # --- Fold the two Linear layers into one exact affine map (4x4 math). ---
    #   (x @ w1.T + b1) @ w2.T + b2  ==  x @ (w2 @ w1).T + (b1 @ w2.T + b2)
    w_fold = (w2 @ w1).astype(jnp.float32)                               # (out, in)
    b_fold = (b1.reshape(1, F) @ w2.T + b2.reshape(1, F)).reshape(F)
    b_fold = b_fold.astype(jnp.float32)

    # Block-diagonal 128x128 operands (32 copies of the 4x4 blocks).
    eye32 = jnp.eye(SAMPLES_PER_ROW, dtype=jnp.float32)
    m_mat = jnp.kron(eye32, w_fold.T)                                    # (128, 128)
    s_mat = jnp.kron(eye32, jnp.ones((F, F), jnp.float32))               # (128, 128)
    b_vec = jnp.tile(b_fold, SAMPLES_PER_ROW).reshape(1, LANES)          # (1, 128)

    # --- Zero-copy interleaved layout: row-major (B, 4) == (R, 128) view. ---
    R = pl.cdiv(B, SAMPLES_PER_ROW)            # 128-lane rows of real data
    n_tiles = pl.cdiv(R, max_rows_per_tile)
    if R >= 256:                               # give v7x's 2nd TensorCore work
        n_tiles = max(n_tiles, 2)
    r_tile = _round_up(pl.cdiv(R, n_tiles), 8)  # sublane-aligned tile rows
    r_pad = n_tiles * r_tile                    # pad only up to a few rows/tile

    flat = x.reshape(B * F)                     # free: contiguous view
    if r_pad * LANES != B * F:
        flat = jnp.pad(flat, (0, r_pad * LANES - B * F))   # copy only when ragged
    x_rows = flat.reshape(r_pad, LANES)         # free: contiguous view

    out_rows = pl.pallas_call(
        classifier_kernel,
        out_shape=jax.ShapeDtypeStruct((r_pad, LANES), jnp.float32),
        grid=(n_tiles,),
        in_specs=[
            pl.BlockSpec((LANES, LANES), lambda i: (0, 0)),    # M (VMEM resident)
            pl.BlockSpec((LANES, LANES), lambda i: (0, 0)),    # S (VMEM resident)
            pl.BlockSpec((1, LANES), lambda i: (0, 0)),        # bias
            pl.BlockSpec((r_tile, LANES), lambda i: (i, 0)),   # input row tile
        ],
        out_specs=pl.BlockSpec((r_tile, LANES), lambda i: (i, 0)),
        compiler_params=pltpu.CompilerParams(
            dimension_semantics=("parallel",),
            vmem_limit_bytes=32 * 1024 * 1024,
        ),
    )(m_mat, s_mat, b_vec, x_rows)

    out = out_rows.reshape(r_pad * LANES)       # free: contiguous view
    if r_pad * LANES != B * F:
        out = out[: B * F]                      # drop padded samples
    return out.reshape(B, F)


def init_params(key):
    # Deterministic init mimicking nn.Linear's uniform(-1/sqrt(fan_in), ...) init.
    k1, k2, k3, k4 = jax.random.split(key, 4)
    bound = 1.0 / jnp.sqrt(4.0)
    w1 = jax.random.uniform(k1, (4, 4), jnp.float32, -bound, bound)
    b1 = jax.random.uniform(k2, (1, 4), jnp.float32, -bound, bound)
    w2 = jax.random.uniform(k3, (4, 4), jnp.float32, -bound, bound)
    b2 = jax.random.uniform(k4, (1, 4), jnp.float32, -bound, bound)
    return w1, b1, w2, b2


if __name__ == "__main__":
    key = jax.random.PRNGKey(0)
    kx, kp = jax.random.split(key)

    B = 50                                     # small, deliberately ragged batch
    x = jax.random.normal(kx, (B, NUM_FEATURES), jnp.float32)
    w1, b1, w2, b2 = init_params(kp)

    fwd = jax.jit(classifier_forward)
    out = jax.block_until_ready(fwd(x, w1, b1, w2, b2))

    # Reference: the original (unfused) module in plain JAX.
    ref = jax.nn.softmax((x @ w1.T + b1) @ w2.T + b2, axis=1)

    assert out.shape == (B, NUM_FEATURES)
    # Tolerance covers possible bf16-pass rounding inside the MXU f32 matmuls
    # (<= ~1e-2 worst case); genuine math/layout errors would be O(0.1 - 1).
    assert jnp.allclose(out, ref, atol=2e-2, rtol=2e-2), \
        float(jnp.max(jnp.abs(out - ref)))
    assert jnp.allclose(jnp.sum(out, axis=1), 1.0, atol=1e-2)

    print("KERNEL_OK")
</pallas_src>

<mosaic_0001>
module attributes {stable_mosaic.version = 11 : i64} {
  func.func @classifier_kernel(%arg0: i32, %arg1: memref<128x128xf32, #tpu.memory_space<vmem>>, %arg2: memref<128x128xf32, #tpu.memory_space<vmem>>, %arg3: memref<1x128xf32, #tpu.memory_space<vmem>>, %arg4: memref<8x128xf32, #tpu.memory_space<vmem>>, %arg5: memref<8x128xf32, #tpu.memory_space<vmem>>) attributes {dimension_semantics = [#tpu.dimension_semantics<parallel>], iteration_bounds = array<i64: 1>, scalar_prefetch = 0 : i64, scratch_operands = 0 : i64, tpu.core_type = #tpu.core_type<tc>, window_params = [{pipeline_mode = #tpu.pipeline_mode<synchronous>, transform_indices = @transform_0, window_bounds = array<i64: 128, 128>}, {pipeline_mode = #tpu.pipeline_mode<synchronous>, transform_indices = @transform_1, window_bounds = array<i64: 128, 128>}, {pipeline_mode = #tpu.pipeline_mode<synchronous>, transform_indices = @transform_2, window_bounds = array<i64: 1, 128>}, {transform_indices = @transform_3, window_bounds = array<i64: 8, 128>}, {transform_indices = @transform_4, window_bounds = array<i64: 8, 128>}]} {
    %c0 = arith.constant 0 : index
    %c0_0 = arith.constant 0 : index
    %0 = vector.load %arg4[%c0, %c0_0] : memref<8x128xf32, #tpu.memory_space<vmem>>, vector<8x128xf32>
    %c0_1 = arith.constant 0 : index
    %c0_2 = arith.constant 0 : index
    %1 = vector.load %arg1[%c0_1, %c0_2] : memref<128x128xf32, #tpu.memory_space<vmem>>, vector<128x128xf32>
    %cst = arith.constant dense<0.000000e+00> : vector<8x128xf32>
    %2 = tpu.matmul %0, %1, %cst {dimension_numbers = #tpu.dot_dimension_numbers<[1], [0], [0], [1], [0, 0, 1, 1], [], []>} : vector<8x128xf32>, vector<128x128xf32>, vector<8x128xf32> -> vector<8x128xf32>
    %c0_3 = arith.constant 0 : index
    %c0_4 = arith.constant 0 : index
    %3 = vector.load %arg3[%c0_3, %c0_4] : memref<1x128xf32, #tpu.memory_space<vmem>>, vector<1x128xf32>
    %4 = vector.broadcast %3 : vector<1x128xf32> to vector<8x128xf32>
    %5 = arith.addf %2, %4 : vector<8x128xf32>
    %6 = tpu.iota {dimensions = array<i32: 1>} : vector<8x128xi32>
    %c2_i32 = arith.constant 2 : i32
    %c0_i32 = arith.constant 0 : i32
    %7 = arith.cmpi eq, %c2_i32, %c0_i32 : i32
    %c1_i32 = arith.constant 1 : i32
    %8 = arith.select %7, %c1_i32, %c2_i32 : i32
    %9 = vector.broadcast %8 : i32 to vector<8x128xi32>
    %10 = arith.remsi %6, %9 : vector<8x128xi32>
    %c0_i32_5 = arith.constant 0 : i32
    %11 = vector.broadcast %c0_i32_5 : i32 to vector<8x128xi32>
    %12 = arith.cmpi ne, %10, %11 : vector<8x128xi32>
    %c0_i32_6 = arith.constant 0 : i32
    %13 = vector.broadcast %c0_i32_6 : i32 to vector<8x128xi32>
    %14 = arith.cmpi slt, %10, %13 : vector<8x128xi32>
    %c0_i32_7 = arith.constant 0 : i32
    %15 = arith.cmpi slt, %8, %c0_i32_7 : i32
    %16 = vector.broadcast %15 : i1 to vector<8x128xi1>
    %17 = vector.broadcast %16 : vector<8x128xi1> to vector<8x128xi1>
    %18 = arith.xori %14, %17 : vector<8x128xi1>
    %19 = arith.andi %18, %12 : vector<8x128xi1>
    %20 = vector.broadcast %8 : i32 to vector<8x128xi32>
    %21 = arith.addi %10, %20 : vector<8x128xi32>
    %22 = arith.select %19, %21, %10 : vector<8x128xi1>, vector<8x128xi32>
    %c0_i32_8 = arith.constant 0 : i32
    %23 = vector.broadcast %c0_i32_8 : i32 to vector<8x128xi32>
    %24 = arith.cmpi eq, %22, %23 : vector<8x128xi32>
    %c4_i32 = arith.constant 4 : i32
    %c0_i32_9 = arith.constant 0 : i32
    %25 = arith.cmpi eq, %c4_i32, %c0_i32_9 : i32
    %c1_i32_10 = arith.constant 1 : i32
    %26 = arith.select %25, %c1_i32_10, %c4_i32 : i32
    %27 = vector.broadcast %26 : i32 to vector<8x128xi32>
    %28 = arith.remsi %6, %27 : vector<8x128xi32>
    %c0_i32_11 = arith.constant 0 : i32
    %29 = vector.broadcast %c0_i32_11 : i32 to vector<8x128xi32>
    %30 = arith.cmpi ne, %28, %29 : vector<8x128xi32>
    %c0_i32_12 = arith.constant 0 : i32
    %31 = vector.broadcast %c0_i32_12 : i32 to vector<8x128xi32>
    %32 = arith.cmpi slt, %28, %31 : vector<8x128xi32>
    %c0_i32_13 = arith.constant 0 : i32
    %33 = arith.cmpi slt, %26, %c0_i32_13 : i32
    %34 = vector.broadcast %33 : i1 to vector<8x128xi1>
    %35 = vector.broadcast %34 : vector<8x128xi1> to vector<8x128xi1>
    %36 = arith.xori %32, %35 : vector<8x128xi1>
    %37 = arith.andi %36, %30 : vector<8x128xi1>
    %38 = vector.broadcast %26 : i32 to vector<8x128xi32>
    %39 = arith.addi %28, %38 : vector<8x128xi32>
    %40 = arith.select %37, %39, %28 : vector<8x128xi1>, vector<8x128xi32>
    %c2_i32_14 = arith.constant 2 : i32
    %41 = vector.broadcast %c2_i32_14 : i32 to vector<8x128xi32>
    %42 = arith.cmpi slt, %40, %41 : vector<8x128xi32>
    %c127_i32 = arith.constant 127 : i32
    %43 = tpu.dynamic_rotate %5 by %c127_i32 dim 1 : vector<8x128xf32>, i32 -> vector<8x128xf32>
    %c1_i32_15 = arith.constant 1 : i32
    %44 = tpu.dynamic_rotate %5 by %c1_i32_15 dim 1 : vector<8x128xf32>, i32 -> vector<8x128xf32>
    %45 = arith.select %24, %43, %44 : vector<8x128xi1>, vector<8x128xf32>
    %46 = arith.maximumf %5, %45 : vector<8x128xf32>
    %c126_i32 = arith.constant 126 : i32
    %47 = tpu.dynamic_rotate %46 by %c126_i32 dim 1 : vector<8x128xf32>, i32 -> vector<8x128xf32>
    %c2_i32_16 = arith.constant 2 : i32
    %48 = tpu.dynamic_rotate %46 by %c2_i32_16 dim 1 : vector<8x128xf32>, i32 -> vector<8x128xf32>
    %49 = arith.select %42, %47, %48 : vector<8x128xi1>, vector<8x128xf32>
    %50 = arith.maximumf %46, %49 : vector<8x128xf32>
    %51 = arith.subf %5, %50 : vector<8x128xf32>
    %52 = math.exp %51 : vector<8x128xf32>
    %c0_17 = arith.constant 0 : index
    %c0_18 = arith.constant 0 : index
    %53 = vector.load %arg2[%c0_17, %c0_18] : memref<128x128xf32, #tpu.memory_space<vmem>>, vector<128x128xf32>
    %cst_19 = arith.constant dense<0.000000e+00> : vector<8x128xf32>
    %54 = tpu.matmul %52, %53, %cst_19 {dimension_numbers = #tpu.dot_dimension_numbers<[1], [0], [0], [1], [0, 0, 1, 1], [], []>} : vector<8x128xf32>, vector<128x128xf32>, vector<8x128xf32> -> vector<8x128xf32>
    %55 = arith.divf %52, %54 : vector<8x128xf32>
    %c0_20 = arith.constant 0 : index
    %c0_21 = arith.constant 0 : index
    %56 = vector.load %arg5[%c0_20, %c0_21] : memref<8x128xf32, #tpu.memory_space<vmem>>, vector<8x128xf32>
    tpu.vector_store %arg5[%c0_20, %c0_21], %55 {strides = array<i32>} : memref<8x128xf32, #tpu.memory_space<vmem>>, vector<8x128xf32>,
    return
  }
  func.func @transform_0(%arg0: i32) -> (i32, i32) {
    %c0_i32 = arith.constant 0 : i32
    %c0_i32_0 = arith.constant 0 : i32
    %c0_i32_1 = arith.constant 0 : i32
    return %c0_i32, %c0_i32_0 : i32, i32
  }
  func.func @transform_1(%arg0: i32) -> (i32, i32) {
    %c0_i32 = arith.constant 0 : i32
    %c0_i32_0 = arith.constant 0 : i32
    %c0_i32_1 = arith.constant 0 : i32
    return %c0_i32, %c0_i32_0 : i32, i32
  }
  func.func @transform_2(%arg0: i32) -> (i32, i32) {
    %c0_i32 = arith.constant 0 : i32
    %c0_i32_0 = arith.constant 0 : i32
    %c0_i32_1 = arith.constant 0 : i32
    return %c0_i32, %c0_i32_0 : i32, i32
  }
  func.func @transform_3(%arg0: i32) -> (i32, i32) {
    %c0_i32 = arith.constant 0 : i32
    %c0_i32_0 = arith.constant 0 : i32
    return %arg0, %c0_i32 : i32, i32
  }
  func.func @transform_4(%arg0: i32) -> (i32, i32) {
    %c0_i32 = arith.constant 0 : i32
    %c0_i32_0 = arith.constant 0 : i32
    return %arg0, %c0_i32 : i32, i32
  }
}

</mosaic_0001>

<llo_original>
// kernel: mul.21
$region0: #{mul.21}
  #allocation0 [shape = 's32[1]{0}', space=sflag, size = 0x4, scoped, tag = 'scoped memory for mul.21']
  %s0 = inlined_call_operand.vmem [shape: f32[128,128], index: 0, kind: input, shape index: {}]
  %s1 = inlined_call_operand.vmem [shape: f32[128,128], index: 1, kind: input, shape index: {}]
  %s2 = inlined_call_operand.vmem [shape: f32[128,128], index: 2, kind: output, shape index: {}]
  %v3 = vld [vmem:[%s0] sm:$0xff]
  %v4 = vld [vmem:[%s1] sm:$0xff]
  %5 = xla_tuple %v3, %v4
  %6 = xla_tuple %5
  %v7 = vmul.f32 %v3, %v4
  %8 = xla_tuple %v7
  %9 = vst [vmem:[%s2] sm:$0xff] %v7
  %s10 = scalar_lea.vmem %s0, 8
  %v11 = vld [vmem:[%s10] sm:$0xff]
  %s12 = scalar_lea.vmem %s1, 8
  %v13 = vld [vmem:[%s12] sm:$0xff]
  %14 = xla_tuple %v11, %v13
  %15 = xla_tuple %14
  %v16 = vmul.f32 %v11, %v13
  %17 = xla_tuple %v16
  %s18 = scalar_lea.vmem %s2, 8
  %19 = vst [vmem:[%s18] sm:$0xff] %v16
  %s20 = scalar_lea.vmem %s0, 16
  %v21 = vld [vmem:[%s20] sm:$0xff]
  %s22 = scalar_lea.vmem %s1, 16
  %v23 = vld [vmem:[%s22] sm:$0xff]
  %24 = xla_tuple %v21, %v23
  %25 = xla_tuple %24
  %v26 = vmul.f32 %v21, %v23
  %27 = xla_tuple %v26
  %s28 = scalar_lea.vmem %s2, 16
  %29 = vst [vmem:[%s28] sm:$0xff] %v26
  %s30 = scalar_lea.vmem %s0, 24
  %v31 = vld [vmem:[%s30] sm:$0xff]
  %s32 = scalar_lea.vmem %s1, 24
  %v33 = vld [vmem:[%s32] sm:$0xff]
  %34 = xla_tuple %v31, %v33
  %35 = xla_tuple %34
  %v36 = vmul.f32 %v31, %v33
  %37 = xla_tuple %v36
  %s38 = scalar_lea.vmem %s2, 24
  %39 = vst [vmem:[%s38] sm:$0xff] %v36
  %s40 = scalar_lea.vmem %s0, 32
  %v41 = vld [vmem:[%s40] sm:$0xff]
  %s42 = scalar_lea.vmem %s1, 32
  %v43 = vld [vmem:[%s42] sm:$0xff]
  %44 = xla_tuple %v41, %v43
  %45 = xla_tuple %44
  %v46 = vmul.f32 %v41, %v43
  %47 = xla_tuple %v46
  %s48 = scalar_lea.vmem %s2, 32
  %49 = vst [vmem:[%s48] sm:$0xff] %v46
  %s50 = scalar_lea.vmem %s0, 40
  %v51 = vld [vmem:[%s50] sm:$0xff]
  %s52 = scalar_lea.vmem %s1, 40
  %v53 = vld [vmem:[%s52] sm:$0xff]
  %54 = xla_tuple %v51, %v53
  %55 = xla_tuple %54
  %v56 = vmul.f32 %v51, %v53
  %57 = xla_tuple %v56
  %s58 = scalar_lea.vmem %s2, 40
  %59 = vst [vmem:[%s58] sm:$0xff] %v56
  %s60 = scalar_lea.vmem %s0, 48
  %v61 = vld [vmem:[%s60] sm:$0xff]
  %s62 = scalar_lea.vmem %s1, 48
  %v63 = vld [vmem:[%s62] sm:$0xff]
  %64 = xla_tuple %v61, %v63
  %65 = xla_tuple %64
  %v66 = vmul.f32 %v61, %v63
  %67 = xla_tuple %v66
  %s68 = scalar_lea.vmem %s2, 48
  %69 = vst [vmem:[%s68] sm:$0xff] %v66
  %s70 = scalar_lea.vmem %s0, 56
  %v71 = vld [vmem:[%s70] sm:$0xff]
  %s72 = scalar_lea.vmem %s1, 56
  %v73 = vld [vmem:[%s72] sm:$0xff]
  %74 = xla_tuple %v71, %v73
  %75 = xla_tuple %74
  %v76 = vmul.f32 %v71, %v73
  %77 = xla_tuple %v76
  %s78 = scalar_lea.vmem %s2, 56
  %79 = vst [vmem:[%s78] sm:$0xff] %v76
  %s80 = scalar_lea.vmem %s0, 64
  %v81 = vld [vmem:[%s80] sm:$0xff]
  %s82 = scalar_lea.vmem %s1, 64
  %v83 = vld [vmem:[%s82] sm:$0xff]
  %84 = xla_tuple %v81, %v83
  %85 = xla_tuple %84
  %v86 = vmul.f32 %v81, %v83
  %87 = xla_tuple %v86
  %s88 = scalar_lea.vmem %s2, 64
  %89 = vst [vmem:[%s88] sm:$0xff] %v86
  %s90 = scalar_lea.vmem %s0, 72
  %v91 = vld [vmem:[%s90] sm:$0xff]
  %s92 = scalar_lea.vmem %s1, 72
  %v93 = vld [vmem:[%s92] sm:$0xff]
  %94 = xla_tuple %v91, %v93
  %95 = xla_tuple %94
  %v96 = vmul.f32 %v91, %v93
  %97 = xla_tuple %v96
  %s98 = scalar_lea.vmem %s2, 72
  %99 = vst [vmem:[%s98] sm:$0xff] %v96
  %s100 = scalar_lea.vmem %s0, 80
  %v101 = vld [vmem:[%s100] sm:$0xff]
  %s102 = scalar_lea.vmem %s1, 80
  %v103 = vld [vmem:[%s102] sm:$0xff]
  %104 = xla_tuple %v101, %v103
  %105 = xla_tuple %104
  %v106 = vmul.f32 %v101, %v103
  %107 = xla_tuple %v106
  %s108 = scalar_lea.vmem %s2, 80
  %109 = vst [vmem:[%s108] sm:$0xff] %v106
  %s110 = scalar_lea.vmem %s0, 88
  %v111 = vld [vmem:[%s110] sm:$0xff]
  %s112 = scalar_lea.vmem %s1, 88
  %v113 = vld [vmem:[%s112] sm:$0xff]
  %114 = xla_tuple %v111, %v113
  %115 = xla_tuple %114
  %v116 = vmul.f32 %v111, %v113
  %117 = xla_tuple %v116
  %s118 = scalar_lea.vmem %s2, 88
  %119 = vst [vmem:[%s118] sm:$0xff] %v116
  %s120 = scalar_lea.vmem %s0, 96
  %v121 = vld [vmem:[%s120] sm:$0xff]
  %s122 = scalar_lea.vmem %s1, 96
  %v123 = vld [vmem:[%s122] sm:$0xff]
  %124 = xla_tuple %v121, %v123
  %125 = xla_tuple %124
  %v126 = vmul.f32 %v121, %v123
  %127 = xla_tuple %v126
  %s128 = scalar_lea.vmem %s2, 96
  %129 = vst [vmem:[%s128] sm:$0xff] %v126
  %s130 = scalar_lea.vmem %s0, 104
  %v131 = vld [vmem:[%s130] sm:$0xff]
  %s132 = scalar_lea.vmem %s1, 104
  %v133 = vld [vmem:[%s132] sm:$0xff]
  %134 = xla_tuple %v131, %v133
  %135 = xla_tuple %134
  %v136 = vmul.f32 %v131, %v133
  %137 = xla_tuple %v136
  %s138 = scalar_lea.vmem %s2, 104
  %139 = vst [vmem:[%s138] sm:$0xff] %v136
  %s140 = scalar_lea.vmem %s0, 112
  %v141 = vld [vmem:[%s140] sm:$0xff]
  %s142 = scalar_lea.vmem %s1, 112
  %v143 = vld [vmem:[%s142] sm:$0xff]
  %144 = xla_tuple %v141, %v143
  %145 = xla_tuple %144
  %v146 = vmul.f32 %v141, %v143
  %147 = xla_tuple %v146
  %s148 = scalar_lea.vmem %s2, 112
  %149 = vst [vmem:[%s148] sm:$0xff] %v146
  %s150 = scalar_lea.vmem %s0, 120
  %v151 = vld [vmem:[%s150] sm:$0xff]
  %s152 = scalar_lea.vmem %s1, 120
  %v153 = vld [vmem:[%s152] sm:$0xff]
  %154 = xla_tuple %v151, %v153
  %155 = xla_tuple %154
  %v156 = vmul.f32 %v151, %v153
  %157 = xla_tuple %v156
  %s158 = scalar_lea.vmem %s2, 120
  %159 = vst [vmem:[%s158] sm:$0xff] %v156

// kernel: tile.6
$region0: #{tile.6}
  #allocation0 [shape = 's32[1]{0}', space=sflag, size = 0x4, scoped, tag = 'scoped memory for tile.6']
  %s0 = inlined_call_operand.vmem [shape: f32[4], index: 0, kind: input, shape index: {}]
  %s1 = inlined_call_operand.vmem [shape: f32[32,4], index: 1, kind: output, shape index: {}]
  // Predicated region
  $region2: #{tile.6} parent=0 // pred_check
    _
  $region3: #{tile.6} parent=0 // pred_check_branch
    %3 = sbr.rel (0) target = $region5
  $region4: #{tile.6} parent=0 // pred_region
    _
  $region5: #{tile.6} parent=0 // pred_fallthru
    _
  %v4 = vld [vmem:[%s0] ss:$0 sm:$0xff]
  %5 = vst [vmem:[%s1] sm:$0xff] %v4
  %s6 = scalar_lea.vmem %s1, 8
  %7 = vst [vmem:[%s6] sm:$0xff] %v4
  %s8 = scalar_lea.vmem %s1, 16
  %9 = vst [vmem:[%s8] sm:$0xff] %v4
  %s10 = scalar_lea.vmem %s1, 24
  %11 = vst [vmem:[%s10] sm:$0xff] %v4

// kernel: tile.7
$region0: #{tile.7}
  %s0 = inlined_call_operand.vmem [shape: f32[32,4], index: 0, kind: input, shape index: {}]
  %s1 = inlined_call_operand.vmem [shape: f32[1,128], index: 1, kind: output, shape index: {}]
  $region1: #{tile.7} parent=0
    #allocation0 [shape = 'u8[4096]{0}', space=vmem, size = 0x1000, scoped, tag = 'scoped mem for output reshape']
    %v2 = vld [vmem:[%s0] sm:$0x1]
    %vm3 = vcmask 31744
    %4 = vst.msk [vmem:[#allocation0] sm:$0x1] %vm3, %v2
    %s5 = scalar_lea.vmem %s0, 31
    %v6 = vld [vmem:[%s5] sm:$0x1]
    %7 = vrot.lane.b32.xlu0 %v6, 124
    %v8 = vpop.permute.xlu0 %7
    %vm9 = vcmask 1048544
    %10 = vst.msk [vmem:[#allocation0] sm:$0x1] %vm9, %v8
    %s11 = scalar_lea.vmem %s0, 30
    %v12 = vld [vmem:[%s11] sm:$0x1]
    %13 = vrot.lane.b32.xlu0 %v12, 120
    %v14 = vpop.permute.xlu0 %13
    %vm15 = vcmask 1015744
    %16 = vst.msk [vmem:[#allocation0] sm:$0x1] %vm15, %v14
    %s17 = scalar_lea.vmem %s0, 29
    %v18 = vld [vmem:[%s17] sm:$0x1]
    %19 = vrot.lane.b32.xlu0 %v18, 116
    %v20 = vpop.permute.xlu0 %19
    %vm21 = vcmask 982944
    %22 = vst.msk [vmem:[#allocation0] sm:$0x1] %vm21, %v20
    %s23 = scalar_lea.vmem %s0, 28
    %v24 = vld [vmem:[%s23] sm:$0x1]
    %25 = vrot.lane.b32.xlu0 %v24, 112
    %v26 = vpop.permute.xlu0 %25
    %vm27 = vcmask 950144
    %28 = vst.msk [vmem:[#allocation0] sm:$0x1] %vm27, %v26
    %s29 = scalar_lea.vmem %s0, 27
    %v30 = vld [vmem:[%s29] sm:$0x1]
    %31 = vrot.lane.b32.xlu0 %v30, 108
    %v32 = vpop.permute.xlu0 %31
    %vm33 = vcmask 917344
    %34 = vst.msk [vmem:[#allocation0] sm:$0x1] %vm33, %v32
    %s35 = scalar_lea.vmem %s0, 26
    %v36 = vld [vmem:[%s35] sm:$0x1]
    %37 = vrot.lane.b32.xlu0 %v36, 104
    %v38 = vpop.permute.xlu0 %37
    %vm39 = vcmask 884544
    %40 = vst.msk [vmem:[#allocation0] sm:$0x1] %vm39, %v38
    %s41 = scalar_lea.vmem %s0, 25
    %v42 = vld [vmem:[%s41] sm:$0x1]
    %43 = vrot.lane.b32.xlu0 %v42, 100
    %v44 = vpop.permute.xlu0 %43
    %vm45 = vcmask 851744
    %46 = vst.msk [vmem:[#allocation0] sm:$0x1] %vm45, %v44
    %s47 = scalar_lea.vmem %s0, 24
    %v48 = vld [vmem:[%s47] sm:$0x1]
    %49 = vrot.lane.b32.xlu0 %v48, 96
    %v50 = vpop.permute.xlu0 %49
    %vm51 = vcmask 818944
    %52 = vst.msk [vmem:[#allocation0] sm:$0x1] %vm51, %v50
    %s53 = scalar_lea.vmem %s0, 23
    %v54 = vld [vmem:[%s53] sm:$0x1]
    %55 = vrot.lane.b32.xlu0 %v54, 92
    %v56 = vpop.permute.xlu0 %55
    %vm57 = vcmask 786144
    %58 = vst.msk [vmem:[#allocation0] sm:$0x1] %vm57, %v56
    %s59 = scalar_lea.vmem %s0, 22
    %v60 = vld [vmem:[%s59] sm:$0x1]
    %61 = vrot.lane.b32.xlu0 %v60, 88
    %v62 = vpop.permute.xlu0 %61
    %vm63 = vcmask 753344
    %64 = vst.msk [vmem:[#allocation0] sm:$0x1] %vm63, %v62
    %s65 = scalar_lea.vmem %s0, 21
    %v66 = vld [vmem:[%s65] sm:$0x1]
    %67 = vrot.lane.b32.xlu0 %v66, 84
    %v68 = vpop.permute.xlu0 %67
    %vm69 = vcmask 720544
    %70 = vst.msk [vmem:[#allocation0] sm:$0x1] %vm69, %v68
    %s71 = scalar_lea.vmem %s0, 20
    %v72 = vld [vmem:[%s71] sm:$0x1]
    %73 = vrot.lane.b32.xlu0 %v72, 80
    %v74 = vpop.permute.xlu0 %73
    %vm75 = vcmask 687744
    %76 = vst.msk [vmem:[#allocation0] sm:$0x1] %vm75, %v74
    %s77 = scalar_lea.vmem %s0, 19
    %v78 = vld [vmem:[%s77] sm:$0x1]
    %79 = vrot.lane.b32.xlu0 %v78, 76
    %v80 = vpop.permute.xlu0 %79
    %vm81 = vcmask 654944
    %82 = vst.msk [vmem:[#allocation0] sm:$0x1] %vm81, %v80
    %s83 = scalar_lea.vmem %s0, 18
    %v84 = vld [vmem:[%s83] sm:$0x1]
    %85 = vrot.lane.b32.xlu0 %v84, 72
    %v86 = vpop.permute.xlu0 %85
    %vm87 = vcmask 622144
    %88 = vst.msk [vmem:[#allocation0] sm:$0x1] %vm87, %v86
    %s89 = scalar_lea.vmem %s0, 17
    %v90 = vld [vmem:[%s89] sm:$0x1]
    %91 = vrot.lane.b32.xlu0 %v90, 68
    %v92 = vpop.permute.xlu0 %91
    %vm93 = vcmask 589344
    %94 = vst.msk [vmem:[#allocation0] sm:$0x1] %vm93, %v92
    %s95 = scalar_lea.vmem %s0, 16
    %v96 = vld [vmem:[%s95] sm:$0x1]
    %97 = vrot.lane.b32.xlu0 %v96, 64
    %v98 = vpop.permute.xlu0 %97
    %vm99 = vcmask 556544
    %100 = vst.msk [vmem:[#allocation0] sm:$0x1] %vm99, %v98
    %s101 = scalar_lea.vmem %s0, 15
    %v102 = vld [vmem:[%s101] sm:$0x1]
    %103 = vrot.lane.b32.xlu0 %v102, 60
    %v104 = vpop.permute.xlu0 %103
    %vm105 = vcmask 523744
    %106 = vst.msk [vmem:[#allocation0] sm:$0x1] %vm105, %v104
    %s107 = scalar_lea.vmem %s0, 14
    %v108 = vld [vmem:[%s107] sm:$0x1]
    %109 = vrot.lane.b32.xlu0 %v108, 56
    %v110 = vpop.permute.xlu0 %109
    %vm111 = vcmask 490944
    %112 = vst.msk [vmem:[#allocation0] sm:$0x1] %vm111, %v110
    %s113 = scalar_lea.vmem %s0, 13
    %v114 = vld [vmem:[%s113] sm:$0x1]
    %115 = vrot.lane.b32.xlu0 %v114, 52
    %v116 = vpop.permute.xlu0 %115
    %vm117 = vcmask 458144
    %118 = vst.msk [vmem:[#allocation0] sm:$0x1] %vm117, %v116
    %s119 = scalar_lea.vmem %s0, 12
    %v120 = vld [vmem:[%s119] sm:$0x1]
    %121 = vrot.lane.b32.xlu0 %v120, 48
    %v122 = vpop.permute.xlu0 %121
    %vm123 = vcmask 425344
    %124 = vst.msk [vmem:[#allocation0] sm:$0x1] %vm123, %v122
    %s125 = scalar_lea.vmem %s0, 11
    %v126 = vld [vmem:[%s125] sm:$0x1]
    %127 = vrot.lane.b32.xlu0 %v126, 44
    %v128 = vpop.permute.xlu0 %127
    %vm129 = vcmask 392544
    %130 = vst.msk [vmem:[#allocation0] sm:$0x1] %vm129, %v128
    %s131 = scalar_lea.vmem %s0, 10
    %v132 = vld [vmem:[%s131] sm:$0x1]
    %133 = vrot.lane.b32.xlu0 %v132, 40
    %v134 = vpop.permute.xlu0 %133
    %vm135 = vcmask 359744
    %136 = vst.msk [vmem:[#allocation0] sm:$0x1] %vm135, %v134
    %s137 = scalar_lea.vmem %s0, 9
    %v138 = vld [vmem:[%s137] sm:$0x1]
    %139 = vrot.lane.b32.xlu0 %v138, 36
    %v140 = vpop.permute.xlu0 %139
    %vm141 = vcmask 326944
    %142 = vst.msk [vmem:[#allocation0] sm:$0x1] %vm141, %v140
    %s143 = scalar_lea.vmem %s0, 8
    %v144 = vld [vmem:[%s143] sm:$0x1]
    %145 = vrot.lane.b32.xlu0 %v144, 32
    %v146 = vpop.permute.xlu0 %145
    %vm147 = vcmask 294144
    %148 = vst.msk [vmem:[#allocation0] sm:$0x1] %vm147, %v146
    %s149 = scalar_lea.vmem %s0, 7
    %v150 = vld [vmem:[%s149] sm:$0x1]
    %151 = vrot.lane.b32.xlu0 %v150, 28
    %v152 = vpop.permute.xlu0 %151
    %vm153 = vcmask 261344
    %154 = vst.msk [vmem:[#allocation0] sm:$0x1] %vm153, %v152
    %s155 = scalar_lea.vmem %s0, 6
    %v156 = vld [vmem:[%s155] sm:$0x1]
    %157 = vrot.lane.b32.xlu0 %v156, 24
    %v158 = vpop.permute.xlu0 %157
    %vm159 = vcmask 228544
    %160 = vst.msk [vmem:[#allocation0] sm:$0x1] %vm159, %v158
    %s161 = scalar_lea.vmem %s0, 5
    %v162 = vld [vmem:[%s161] sm:$0x1]
    %163 = vrot.lane.b32.xlu0 %v162, 20
    %v164 = vpop.permute.xlu0 %163
    %vm165 = vcmask 195744
    %166 = vst.msk [vmem:[#allocation0] sm:$0x1] %vm165, %v164
    %s167 = scalar_lea.vmem %s0, 4
    %v168 = vld [vmem:[%s167] sm:$0x1]
    %169 = vrot.lane.b32.xlu0 %v168, 16
    %v170 = vpop.permute.xlu0 %169
    %vm171 = vcmask 162944
    %172 = vst.msk [vmem:[#allocation0] sm:$0x1] %vm171, %v170
    %s173 = scalar_lea.vmem %s0, 3
    %v174 = vld [vmem:[%s173] sm:$0x1]
    %175 = vrot.lane.b32.xlu0 %v174, 12
    %v176 = vpop.permute.xlu0 %175
    %vm177 = vcmask 130144
    %178 = vst.msk [vmem:[#allocation0] sm:$0x1] %vm177, %v176
    %s179 = scalar_lea.vmem %s0, 2
    %v180 = vld [vmem:[%s179] sm:$0x1]
    %181 = vrot.lane.b32.xlu0 %v180, 8
    %v182 = vpop.permute.xlu0 %181
    %vm183 = vcmask 97344
    %184 = vst.msk [vmem:[#allocation0] sm:$0x1] %vm183, %v182
    %s185 = scalar_lea.vmem %s0, 1
    %v186 = vld [vmem:[%s185] sm:$0x1]
    %187 = vrot.lane.b32.xlu0 %v186, 4
    %v188 = vpop.permute.xlu0 %187
    %vm189 = vcmask 64544
    %190 = vst.msk [vmem:[#allocation0] sm:$0x1] %vm189, %v188
    %s192 = ssub.s32 2, 1
    %v193 = vld [vmem:[#allocation0] sm:%s192]
    %s195 = ssub.s32 2, 1
    %196 = vst [vmem:[%s1] sm:%s195] %v193

// kernel: classifier_forward.1
$region0: #{classifier_forward.1}
  #allocation0 [shape = 'u32[]', space=smem, size = 0x4, offset = 0x4, fixed_abs, tag = 'smem constant byte address 0x4 - core index']
  #allocation1 [shape = 'u32[72,128]{1,0:T(1,128)}', space=vmem, size = 0x9000, scoped, tag = 'internal scratch']
  %s0 = inlined_call_operand.vmem [shape: f32[128,128], index: 0, kind: input, shape index: {}]
  %s1 = inlined_call_operand.vmem [shape: f32[128,128], index: 1, kind: input, shape index: {}]
  %s2 = inlined_call_operand.vmem [shape: f32[1,128], index: 2, kind: input, shape index: {}]
  %s3 = inlined_call_operand.vmem [shape: f32[8,128], index: 3, kind: input, shape index: {}]
  %s4 = inlined_call_operand.vmem [shape: f32[8,128], index: 4, kind: output, shape index: {}]
  %s5 = sld [smem:[#allocation0]]
  $region26: #{classifier_forward.1} parent=0
    _
  %s7 = ssub.s32 1, %s5
  %s8 = scalar_select 0, %s7, %s5
  // Predicated region
  $region2: #{classifier_forward.1} parent=0 // pred_check
    _
  $region3: #{classifier_forward.1} parent=0 // pred_check_branch
    %10 = sbr.rel (0) target = $region5
  $region4: #{classifier_forward.1} parent=0 // pred_region
    _
  $region5: #{classifier_forward.1} parent=0 // pred_fallthru
    _
  // Predicated region
  $region6: #{classifier_forward.1} parent=0 // pred_check
    _
  $region7: #{classifier_forward.1} parent=0 // pred_check_branch
    %12 = sbr.rel (0) target = $region9
  $region8: #{classifier_forward.1} parent=0 // pred_region
    _
  $region9: #{classifier_forward.1} parent=0 // pred_fallthru
    _
  // Predicated region
  $region10: #{classifier_forward.1} parent=0 // pred_check
    _
  $region11: #{classifier_forward.1} parent=0 // pred_check_branch
    %14 = sbr.rel (0) target = $region13
  $region12: #{classifier_forward.1} parent=0 // pred_region
    _
  $region13: #{classifier_forward.1} parent=0 // pred_fallthru
    _
  // Predicated region
  $region14: #{classifier_forward.1} parent=0 // pred_check
    _
  $region15: #{classifier_forward.1} parent=0 // pred_check_branch
    %16 = sbr.rel (0) target = $region17
  $region16: #{classifier_forward.1} parent=0 // pred_region
    _
  $region17: #{classifier_forward.1} parent=0 // pred_fallthru
    _
  %v17 = vld [vmem:[%s3] sm:$0xff]
  %v18 = vld [vmem:[%s0] sm:$0xff]
  %v19 = vld [vmem:[%s0 + $0x8] sm:$0xff]
  %v20 = vld [vmem:[%s0 + $0x10] sm:$0xff]
  %v21 = vld [vmem:[%s0 + $0x18] sm:$0xff]
  %v22 = vld [vmem:[%s0 + $0x20] sm:$0xff]
  %v23 = vld [vmem:[%s0 + $0x28] sm:$0xff]
  %v24 = vld [vmem:[%s0 + $0x30] sm:$0xff]
  %v25 = vld [vmem:[%s0 + $0x38] sm:$0xff]
  %v26 = vld [vmem:[%s0 + $0x40] sm:$0xff]
  %v27 = vld [vmem:[%s0 + $0x48] sm:$0xff]
  %v28 = vld [vmem:[%s0 + $0x50] sm:$0xff]
  %v29 = vld [vmem:[%s0 + $0x58] sm:$0xff]
  %v30 = vld [vmem:[%s0 + $0x60] sm:$0xff]
  %v31 = vld [vmem:[%s0 + $0x68] sm:$0xff]
  %v32 = vld [vmem:[%s0 + $0x70] sm:$0xff]
  %v33 = vld [vmem:[%s0 + $0x78] sm:$0xff]
  %v34 = vld [vmem:[%s2] sm:$0x1]
  %v36 = vperm.slane %v34, 0
  %38 = vmatpush.msra.mxu0 %v33
  %39 = vmatpush.msra.mxu0 %v32
  %40 = vmatpush.msra.mxu0 %v31
  %41 = vmatpush.msra.mxu0 %v30
  %42 = vmatpush.msra.mxu0 %v29
  %43 = vmatpush.msra.mxu0 %v28
  %44 = vmatpush.msra.mxu0 %v27
  %45 = vmatpush.msra.mxu0 %v26
  %46 = vmatpush.msra.mxu0 %v25
  %47 = vmatpush.msra.mxu0 %v24
  %48 = vmatpush.msra.mxu0 %v23
  %49 = vmatpush.msra.mxu0 %v22
  %50 = vmatpush.msra.mxu0 %v21
  %51 = vmatpush.msra.mxu0 %v20
  %52 = vmatpush.msra.mxu0 %v19
  %53 = vmatpush.msra.mxu0 %v18
  %54 = vmatmul.f32.gmra.mxu0 %v17
  %v55 = vpop.f32.mrf.mxu0
  %v56 = vadd.f32 %v36, %v55
  %57 = vdwg.mxu0
  %v58 = vlaneseq
  %v59 = vand.u32 %v58, 127
  %vm60 = vcmp.lt.s32.totalorder %v59, 0
  %v61 = vsub.s32 0, %v59
  %v62 = vsel %vm60, %v61, %v59
  %v63 = vshrl.u32 %v62, 1
  %v64 = vand.u32 %v62, 1
  %v65 = vsub.s32 0, %v64
  %v66 = vsel %vm60, %v65, %v64
  %vm67 = vcmp.ne.s32.totalorder %v66, 0
  %vm68 = vcmp.lt.s32.totalorder %v66, 0
  %vm69 = vmand %vm68, %vm67
  %v70 = vadd.s32 %v66, 2
  %v71 = vsel %vm69, %v70, %v66
  %vm72 = vcmp.eq.s32.totalorder %v71, 0
  %vm73 = vcmp.lt.s32.totalorder %v59, 0
  %v74 = vsub.s32 0, %v59
  %v75 = vsel %vm73, %v74, %v59
  %v76 = vshrl.u32 %v75, 2
  %v77 = vand.u32 %v75, 3
  %v78 = vsub.s32 0, %v77
  %v79 = vsel %vm73, %v78, %v77
  %vm80 = vcmp.ne.s32.totalorder %v79, 0
  %vm81 = vcmp.lt.s32.totalorder %v79, 0
  %vm82 = vmand %vm81, %vm80
  %v83 = vadd.s32 %v79, 4
  %v84 = vsel %vm82, %v83, %v79
  %vm85 = vcmp.lt.s32.totalorder %v84, 2
  %86 = vrot.lane.b32.xlu0 %v56, 127
  %v87 = vpop.permute.xlu0 %86
  %88 = vrot.lane.b32.xlu0 %v56, 1
  %v89 = vpop.permute.xlu0 %88
  %v90 = vsel %vm72, %v87, %v89
  %v91 = vmax.f32 %v56, %v90
  %92 = vrot.lane.b32.xlu0 %v91, 126
  %v93 = vpop.permute.xlu0 %92
  %94 = vrot.lane.b32.xlu0 %v91, 2
  %v95 = vpop.permute.xlu0 %94
  %v96 = vsel %vm85, %v93, %v95
  %v97 = vmax.f32 %v91, %v96
  %v98 = vsub.f32 %v56, %v97
  %v99 = vmul.f32 %v98, 1.442695
  %v100 = vpow.pop %v99
  %v101 = vld [vmem:[%s1] sm:$0xff]
  %v102 = vld [vmem:[%s1 + $0x8] sm:$0xff]
  %v103 = vld [vmem:[%s1 + $0x10] sm:$0xff]
  %v104 = vld [vmem:[%s1 + $0x18] sm:$0xff]
  %v105 = vld [vmem:[%s1 + $0x20] sm:$0xff]
  %v106 = vld [vmem:[%s1 + $0x28] sm:$0xff]
  %v107 = vld [vmem:[%s1 + $0x30] sm:$0xff]
  %v108 = vld [vmem:[%s1 + $0x38] sm:$0xff]
  %v109 = vld [vmem:[%s1 + $0x40] sm:$0xff]
  %v110 = vld [vmem:[%s1 + $0x48] sm:$0xff]
  %v111 = vld [vmem:[%s1 + $0x50] sm:$0xff]
  %v112 = vld [vmem:[%s1 + $0x58] sm:$0xff]
  %v113 = vld [vmem:[%s1 + $0x60] sm:$0xff]
  %v114 = vld [vmem:[%s1 + $0x68] sm:$0xff]
  %v115 = vld [vmem:[%s1 + $0x70] sm:$0xff]
  %v116 = vld [vmem:[%s1 + $0x78] sm:$0xff]
  %117 = vmatpush.msra.mxu0 %v116
  %118 = vmatpush.msra.mxu0 %v115
  %119 = vmatpush.msra.mxu0 %v114
  %120 = vmatpush.msra.mxu0 %v113
  %121 = vmatpush.msra.mxu0 %v112
  %122 = vmatpush.msra.mxu0 %v111
  %123 = vmatpush.msra.mxu0 %v110
  %124 = vmatpush.msra.mxu0 %v109
  %125 = vmatpush.msra.mxu0 %v108
  %126 = vmatpush.msra.mxu0 %v107
  %127 = vmatpush.msra.mxu0 %v106
  %128 = vmatpush.msra.mxu0 %v105
  %129 = vmatpush.msra.mxu0 %v104
  %130 = vmatpush.msra.mxu0 %v103
  %131 = vmatpush.msra.mxu0 %v102
  %132 = vmatpush.msra.mxu0 %v101
  %133 = vmatmul.f32.gmra.mxu0 %v100
  %v134 = vpop.f32.mrf.mxu0
  %v135 = vadd.f32 0.0, %v134
  %136 = vdwg.mxu0
  %v137 = vrcp.pop %v135
  %v138 = vmul.f32 %v135, %v137
  %v139 = vsub.f32 1.0, %v138
  %v140 = vmul.f32 %v137, %v139
  %v141 = vadd.f32 %v137, %v140
  %vm142 = vweird.f32 %v135
  %vm143 = vweird.f32 %v137
  %vm144 = vmor %vm142, %vm143
  %v145 = vsel %vm144, %v137, %v141
  %v146 = vand.u32 2147483647, %v135
  %vm147 = vcmp.eq.f32.partialorder %v146, 8.507059e+37
  %v148 = vand.u32 %v135, 2147483648
  %v149 = vor.u32 1.1754944e-38, %v148
  %v150 = vsel %vm147, %v149, %v145
  %v151 = vmul.f32 %v100, %v150
  %152 = vst [vmem:[%s4] sm:$0xff] %v151
  // Predicated region
  $region18: #{classifier_forward.1} parent=0 // pred_check
    _
  $region19: #{classifier_forward.1} parent=0 // pred_check_branch
    %154 = sbr.rel (0) target = $region21
  $region20: #{classifier_forward.1} parent=0 // pred_region
    _
  $region21: #{classifier_forward.1} parent=0 // pred_fallthru
    _
  // Predicated region
  $region22: #{classifier_forward.1} parent=0 // pred_check
    _
  $region23: #{classifier_forward.1} parent=0 // pred_check_branch
    %156 = sbr.rel (0) target = $region25
  $region24: #{classifier_forward.1} parent=0 // pred_region
    _
  $region25: #{classifier_forward.1} parent=0 // pred_fallthru
    _

</llo_original>
